<compile_context>
chip_gen: v5e
topology: v5e:2x2
jax: 0.10.0
libtpu: 0.0.40
codegen_flags: <defaults>
</compile_context>

<pallas_src>
import functools

import jax
import jax.numpy as jnp
from jax.experimental import pallas as pl
from jax.experimental.pallas import tpu as pltpu


def mlp_kernel(x_ref, w1_ref, b1_ref, w2_ref, b2_ref, w3_ref, b3_ref, o_ref):
    # Cast streamed activations to the MXU operand dtype in VMEM (no extra HBM pass).
    x = x_ref[...].astype(w1_ref.dtype)
    # layer 1 + ReLU: MXU matmul with f32 accumulation, f32 bias/ReLU on the VPU.
    h1 = jnp.dot(x, w1_ref[...], preferred_element_type=jnp.float32) + b1_ref[...]
    h1 = jnp.maximum(h1, 0.0).astype(w2_ref.dtype)
    # layer 2 + ReLU
    h2 = jnp.dot(h1, w2_ref[...], preferred_element_type=jnp.float32) + b2_ref[...]
    h2 = jnp.maximum(h2, 0.0).astype(w3_ref.dtype)
    # layer 3 (logits, no activation)
    o_ref[...] = (
        jnp.dot(h2, w3_ref[...], preferred_element_type=jnp.float32) + b3_ref[...]
    ).astype(o_ref.dtype)


def _cdiv(a, b):
    return -(-a // b)


def _round_up(n, m):
    return _cdiv(n, m) * m


def _pad2d(a, rows, cols):
    r, c = a.shape
    if r == rows and c == cols:
        return a
    return jnp.pad(a, ((0, rows - r), (0, cols - c)))


def prepare_params(params, *, operand_dtype=jnp.bfloat16, lane_align=None):
    """Pad + cast the weights ONCE (outside the per-step forward).

    Weights are stored (in, out).  Hidden/class dims are zero-padded to a
    lane-aligned width so all matmul N dims and the logits store are
    lane-dense; padding is exact (zero rows/cols contribute nothing and are
    sliced off).  w1's input dim is left unpadded so x never needs a padded
    HBM copy.  MXU operands go to `operand_dtype` (bf16 default); biases stay
    f32 for the f32 accumulate/bias/ReLU path in the kernel.
    """
    d_in, h = params["w1"].shape
    c = params["w3"].shape[1]
    if lane_align is None:
        # v6e/v7x MXUs are 256-wide; use 256 alignment only when the model is
        # large enough to be compute-bound, otherwise the minimal 128.
        lane_align = 256 if h >= 2048 else 128
    h_p = _round_up(h, lane_align)
    c_p = _round_up(c, 128)
    return {
        "w1": _pad2d(params["w1"], d_in, h_p).astype(operand_dtype),
        "b1": _pad2d(params["b1"], 1, h_p).astype(jnp.float32),
        "w2": _pad2d(params["w2"], h_p, h_p).astype(operand_dtype),
        "b2": _pad2d(params["b2"], 1, h_p).astype(jnp.float32),
        "w3": _pad2d(params["w3"], h_p, c_p).astype(operand_dtype),
        "b3": _pad2d(params["b3"], 1, c_p).astype(jnp.float32),
    }


@functools.partial(jax.jit, static_argnames=("num_classes", "tile_b", "x_buffers"))
def neural_net_forward(x, padded_params, *, num_classes, tile_b=512, x_buffers=2):
    """Fused 3-layer MLP forward.  x: (B, d_in) f32; params from prepare_params."""
    B, d_in = x.shape
    w1, b1 = padded_params["w1"], padded_params["b1"]
    w2, b2 = padded_params["w2"], padded_params["b2"]
    w3, b3 = padded_params["w3"], padded_params["b3"]
    h_p = w1.shape[1]
    c_p = w3.shape[1]
    op_bytes = jnp.dtype(w1.dtype).itemsize
    x_bytes = jnp.dtype(x.dtype).itemsize

    # --- batch tiling --------------------------------------------------------
    # Balanced tiles (caps padding waste well below one full tile), rows a
    # multiple of 8 (16 for packed bf16 operands).  For large batches keep
    # >= 2 tiles so both v7x TensorCores get work from the "parallel" axis.
    row_mult = 16 if op_bytes < 4 else 8
    n_tiles = max(1, _cdiv(B, tile_b))
    if n_tiles == 1 and B >= 512:
        n_tiles = 2
    tile_b_eff = max(row_mult, _round_up(_cdiv(B, n_tiles), row_mult))
    b_p = n_tiles * tile_b_eff

    # Only row-pad x when the batch is ragged; never lane-pad or cast it in
    # HBM (the cast to the MXU operand dtype happens inside the kernel).
    x_p = jnp.pad(x, ((0, b_p - B), (0, 0))) if b_p != B else x

    # --- VMEM budget ---------------------------------------------------------
    weight_elems = d_in * h_p + h_p * h_p + h_p * c_p
    vmem_bytes = (
        weight_elems * op_bytes                        # resident weights (1 buffer)
        + (2 * h_p + c_p) * 4                          # resident f32 biases
        + x_buffers * tile_b_eff * d_in * x_bytes      # pipelined x tiles
        + 2 * tile_b_eff * c_p * 4                     # double-buffered out tiles
        + tile_b_eff * d_in * op_bytes                 # in-kernel x cast
        + 2 * tile_b_eff * h_p * (4 + op_bytes)        # h1/h2 f32 + cast copies
    )
    vmem_limit = min(max(2 * vmem_bytes, 32 * 1024 * 1024), 64 * 1024 * 1024)
    # TODO(synk): if resident weights ever exceed the 64 MiB/TC v7x budget
    # (hidden >= ~4096 bf16), add a grid axis over the hidden dim instead of
    # keeping all three layers fully resident.

    cost = pl.CostEstimate(
        flops=2 * b_p * weight_elems,
        transcendentals=0,
        bytes_accessed=(
            b_p * d_in * x_bytes
            + weight_elems * op_bytes
            + (2 * h_p + c_p) * 4
            + b_p * c_p * 4
        ),
    )

    resident = lambda i: (0, 0)      # constant block index -> stays in VMEM
    single = pl.Buffered(1)          # no re-DMA ever happens, 1 buffer suffices
    if x_buffers == 2:
        x_spec = pl.BlockSpec((tile_b_eff, d_in), lambda i: (i, 0))
    else:
        x_spec = pl.BlockSpec(
            (tile_b_eff, d_in), lambda i: (i, 0), pipeline_mode=pl.Buffered(x_buffers)
        )

    out_p = pl.pallas_call(
        mlp_kernel,
        out_shape=jax.ShapeDtypeStruct((b_p, c_p), jnp.float32),
        grid=(n_tiles,),
        in_specs=[
            x_spec,                                                        # x (streamed)
            pl.BlockSpec((d_in, h_p), resident, pipeline_mode=single),     # w1
            pl.BlockSpec((1, h_p), resident, pipeline_mode=single),        # b1
            pl.BlockSpec((h_p, h_p), resident, pipeline_mode=single),      # w2
            pl.BlockSpec((1, h_p), resident, pipeline_mode=single),        # b2
            pl.BlockSpec((h_p, c_p), resident, pipeline_mode=single),      # w3
            pl.BlockSpec((1, c_p), resident, pipeline_mode=single),        # b3
        ],
        out_specs=pl.BlockSpec((tile_b_eff, c_p), lambda i: (i, 0)),
        compiler_params=pltpu.CompilerParams(
            dimension_semantics=("parallel",),
            vmem_limit_bytes=int(vmem_limit),
        ),
        cost_estimate=cost,
    )(x_p, w1, b1, w2, b2, w3, b3)

    # Slice off batch-row and class-lane padding.
    return out_p[:B, :num_classes]


def init_params(key, input_size, hidden_size, num_classes):
    """PyTorch-style Linear init: U(-1/sqrt(fan_in), 1/sqrt(fan_in))."""
    def linear(k, fan_in, fan_out):
        kw, kb = jax.random.split(k)
        bound = 1.0 / jnp.sqrt(jnp.float32(fan_in))
        # stored as (in, out) so the kernel computes x @ W  (== x @ W_pt.T + b)
        w = jax.random.uniform(kw, (fan_in, fan_out), jnp.float32, -bound, bound)
        b = jax.random.uniform(kb, (1, fan_out), jnp.float32, -bound, bound)
        return w, b

    k1, k2, k3 = jax.random.split(key, 3)
    w1, b1 = linear(k1, input_size, hidden_size)
    w2, b2 = linear(k2, hidden_size, hidden_size)
    w3, b3 = linear(k3, hidden_size, num_classes)
    return {"w1": w1, "b1": b1, "w2": w2, "b2": b2, "w3": w3, "b3": b3}


def reference_forward(x, p):
    h1 = jnp.maximum(x @ p["w1"] + p["b1"], 0.0)
    h2 = jnp.maximum(h1 @ p["w2"] + p["b2"], 0.0)
    return h2 @ p["w3"] + p["b3"]


if __name__ == "__main__":
    batch = 8
    input_size = 16     # len(X_train[0]) in the original script (synthetic choice)
    hidden_size = 8
    num_classes = 4

    key = jax.random.PRNGKey(0)
    kx, kp = jax.random.split(key)
    x = jax.random.normal(kx, (batch, input_size), jnp.float32)
    params = init_params(kp, input_size, hidden_size, num_classes)
    ref = reference_forward(x, params)

    # Exactness check: f32 MXU operands must match the reference tightly.
    prepared_f32 = prepare_params(params, operand_dtype=jnp.float32)
    out_f32 = jax.block_until_ready(
        neural_net_forward(x, prepared_f32, num_classes=num_classes)
    )
    assert out_f32.shape == (batch, num_classes)
    assert jnp.allclose(out_f32, ref, atol=1e-5, rtol=1e-5)

    # Default fast path: bf16 MXU operands, f32 accumulation/bias/ReLU.
    prepared = prepare_params(params)
    out = jax.block_until_ready(
        neural_net_forward(x, prepared, num_classes=num_classes)
    )
    assert out.shape == (batch, num_classes)
    assert jnp.allclose(out, ref, atol=5e-2, rtol=5e-2)

    print("KERNEL_OK")
</pallas_src>

<mosaic_0001>
module attributes {stable_mosaic.version = 11 : i64} {
  func.func @mlp_kernel(%arg0: i32, %arg1: memref<8x16xf32, #tpu.memory_space<vmem>>, %arg2: memref<16x128xf32, #tpu.memory_space<vmem>>, %arg3: memref<1x128xf32, #tpu.memory_space<vmem>>, %arg4: memref<128x128xf32, #tpu.memory_space<vmem>>, %arg5: memref<1x128xf32, #tpu.memory_space<vmem>>, %arg6: memref<128x128xf32, #tpu.memory_space<vmem>>, %arg7: memref<1x128xf32, #tpu.memory_space<vmem>>, %arg8: memref<8x128xf32, #tpu.memory_space<vmem>>) attributes {dimension_semantics = [#tpu.dimension_semantics<parallel>], iteration_bounds = array<i64: 1>, scalar_prefetch = 0 : i64, scratch_operands = 0 : i64, tpu.core_type = #tpu.core_type<tc>, window_params = [{transform_indices = @transform_0, window_bounds = array<i64: 8, 16>}, {pipeline_mode = #tpu.pipeline_mode<synchronous>, transform_indices = @transform_1, window_bounds = array<i64: 16, 128>}, {pipeline_mode = #tpu.pipeline_mode<synchronous>, transform_indices = @transform_2, window_bounds = array<i64: 1, 128>}, {pipeline_mode = #tpu.pipeline_mode<synchronous>, transform_indices = @transform_3, window_bounds = array<i64: 128, 128>}, {pipeline_mode = #tpu.pipeline_mode<synchronous>, transform_indices = @transform_4, window_bounds = array<i64: 1, 128>}, {pipeline_mode = #tpu.pipeline_mode<synchronous>, transform_indices = @transform_5, window_bounds = array<i64: 128, 128>}, {pipeline_mode = #tpu.pipeline_mode<synchronous>, transform_indices = @transform_6, window_bounds = array<i64: 1, 128>}, {transform_indices = @transform_7, window_bounds = array<i64: 8, 128>}]} {
    %c0 = arith.constant 0 : index
    %c0_0 = arith.constant 0 : index
    %0 = vector.load %arg1[%c0, %c0_0] : memref<8x16xf32, #tpu.memory_space<vmem>>, vector<8x16xf32>
    %c0_1 = arith.constant 0 : index
    %c0_2 = arith.constant 0 : index
    %1 = vector.load %arg2[%c0_1, %c0_2] : memref<16x128xf32, #tpu.memory_space<vmem>>, vector<16x128xf32>
    %cst = arith.constant dense<0.000000e+00> : vector<8x128xf32>
    %2 = tpu.matmul %0, %1, %cst {dimension_numbers = #tpu.dot_dimension_numbers<[1], [0], [0], [1], [0, 0, 1, 1], [], []>} : vector<8x16xf32>, vector<16x128xf32>, vector<8x128xf32> -> vector<8x128xf32>
    %c0_3 = arith.constant 0 : index
    %c0_4 = arith.constant 0 : index
    %3 = vector.load %arg3[%c0_3, %c0_4] : memref<1x128xf32, #tpu.memory_space<vmem>>, vector<1x128xf32>
    %4 = vector.broadcast %3 : vector<1x128xf32> to vector<8x128xf32>
    %5 = arith.addf %2, %4 : vector<8x128xf32>
    %cst_5 = arith.constant 0.000000e+00 : f32
    %6 = vector.broadcast %cst_5 : f32 to vector<8x128xf32>
    %7 = arith.maximumf %5, %6 : vector<8x128xf32>
    %c0_6 = arith.constant 0 : index
    %c0_7 = arith.constant 0 : index
    %8 = vector.load %arg4[%c0_6, %c0_7] : memref<128x128xf32, #tpu.memory_space<vmem>>, vector<128x128xf32>
    %cst_8 = arith.constant dense<0.000000e+00> : vector<8x128xf32>
    %9 = tpu.matmul %7, %8, %cst_8 {dimension_numbers = #tpu.dot_dimension_numbers<[1], [0], [0], [1], [0, 0, 1, 1], [], []>} : vector<8x128xf32>, vector<128x128xf32>, vector<8x128xf32> -> vector<8x128xf32>
    %c0_9 = arith.constant 0 : index
    %c0_10 = arith.constant 0 : index
    %10 = vector.load %arg5[%c0_9, %c0_10] : memref<1x128xf32, #tpu.memory_space<vmem>>, vector<1x128xf32>
    %11 = vector.broadcast %10 : vector<1x128xf32> to vector<8x128xf32>
    %12 = arith.addf %9, %11 : vector<8x128xf32>
    %cst_11 = arith.constant 0.000000e+00 : f32
    %13 = vector.broadcast %cst_11 : f32 to vector<8x128xf32>
    %14 = arith.maximumf %12, %13 : vector<8x128xf32>
    %c0_12 = arith.constant 0 : index
    %c0_13 = arith.constant 0 : index
    %15 = vector.load %arg6[%c0_12, %c0_13] : memref<128x128xf32, #tpu.memory_space<vmem>>, vector<128x128xf32>
    %cst_14 = arith.constant dense<0.000000e+00> : vector<8x128xf32>
    %16 = tpu.matmul %14, %15, %cst_14 {dimension_numbers = #tpu.dot_dimension_numbers<[1], [0], [0], [1], [0, 0, 1, 1], [], []>} : vector<8x128xf32>, vector<128x128xf32>, vector<8x128xf32> -> vector<8x128xf32>
    %c0_15 = arith.constant 0 : index
    %c0_16 = arith.constant 0 : index
    %17 = vector.load %arg7[%c0_15, %c0_16] : memref<1x128xf32, #tpu.memory_space<vmem>>, vector<1x128xf32>
    %18 = vector.broadcast %17 : vector<1x128xf32> to vector<8x128xf32>
    %19 = arith.addf %16, %18 : vector<8x128xf32>
    %c0_17 = arith.constant 0 : index
    %c0_18 = arith.constant 0 : index
    %20 = vector.load %arg8[%c0_17, %c0_18] : memref<8x128xf32, #tpu.memory_space<vmem>>, vector<8x128xf32>
    tpu.vector_store %arg8[%c0_17, %c0_18], %19 {strides = array<i32>} : memref<8x128xf32, #tpu.memory_space<vmem>>, vector<8x128xf32>,
    return
  }
  func.func @transform_0(%arg0: i32) -> (i32, i32) {
    %c0_i32 = arith.constant 0 : i32
    %c0_i32_0 = arith.constant 0 : i32
    return %arg0, %c0_i32 : i32, i32
  }
  func.func @transform_1(%arg0: i32) -> (i32, i32) {
    %c0_i32 = arith.constant 0 : i32
    %c0_i32_0 = arith.constant 0 : i32
    %c0_i32_1 = arith.constant 0 : i32
    return %c0_i32, %c0_i32_0 : i32, i32
  }
  func.func @transform_2(%arg0: i32) -> (i32, i32) {
    %c0_i32 = arith.constant 0 : i32
    %c0_i32_0 = arith.constant 0 : i32
    %c0_i32_1 = arith.constant 0 : i32
    return %c0_i32, %c0_i32_0 : i32, i32
  }
  func.func @transform_3(%arg0: i32) -> (i32, i32) {
    %c0_i32 = arith.constant 0 : i32
    %c0_i32_0 = arith.constant 0 : i32
    %c0_i32_1 = arith.constant 0 : i32
    return %c0_i32, %c0_i32_0 : i32, i32
  }
  func.func @transform_4(%arg0: i32) -> (i32, i32) {
    %c0_i32 = arith.constant 0 : i32
    %c0_i32_0 = arith.constant 0 : i32
    %c0_i32_1 = arith.constant 0 : i32
    return %c0_i32, %c0_i32_0 : i32, i32
  }
  func.func @transform_5(%arg0: i32) -> (i32, i32) {
    %c0_i32 = arith.constant 0 : i32
    %c0_i32_0 = arith.constant 0 : i32
    %c0_i32_1 = arith.constant 0 : i32
    return %c0_i32, %c0_i32_0 : i32, i32
  }
  func.func @transform_6(%arg0: i32) -> (i32, i32) {
    %c0_i32 = arith.constant 0 : i32
    %c0_i32_0 = arith.constant 0 : i32
    %c0_i32_1 = arith.constant 0 : i32
    return %c0_i32, %c0_i32_0 : i32, i32
  }
  func.func @transform_7(%arg0: i32) -> (i32, i32) {
    %c0_i32 = arith.constant 0 : i32
    %c0_i32_0 = arith.constant 0 : i32
    return %arg0, %c0_i32 : i32, i32
  }
}

</mosaic_0001>

<llo_original>
// kernel: neural_net_forward.1
$region0: #{neural_net_forward.1}
  #allocation0 [shape = 'u32[]', space=smem, size = 0x4, offset = 0x4, fixed_abs, tag = 'smem constant byte address 0x4 - core index']
  #allocation1 [shape = 'u32[72,128]{1,0:T(1,128)}', space=vmem, size = 0x9000, scoped, tag = 'internal scratch']
  %s0 = inlined_call_operand.hbm [shape: f32[8,16], index: 0, kind: input, shape index: {}]
  %s1 = inlined_call_operand.hbm [shape: f32[16,128], index: 1, kind: input, shape index: {}]
  %s2 = inlined_call_operand.hbm [shape: f32[1,128], index: 2, kind: input, shape index: {}]
  %s3 = inlined_call_operand.hbm [shape: f32[128,128], index: 3, kind: input, shape index: {}]
  %s4 = inlined_call_operand.vmem [shape: f32[1,128], index: 4, kind: input, shape index: {}]
  %s5 = inlined_call_operand.hbm [shape: f32[128,128], index: 5, kind: input, shape index: {}]
  %s6 = inlined_call_operand.vmem [shape: f32[1,128], index: 6, kind: input, shape index: {}]
  %s7 = inlined_call_operand.vmem [shape: f32[8,128], index: 7, kind: output, shape index: {}]
  %s8 = sld [smem:[#allocation0]]
  $region58: #{neural_net_forward.1} parent=0
    _
  %s10 = ssub.s32 1, %s8
  %s11 = scalar_select 0, %s10, %s8
  $region1: #{neural_net_forward.1} parent=0
    #allocation2 [shape = 'u8[4096]{0}', space=vmem, size = 0x1000, scoped, tag = 'input window, operand 0, single buffered']
    #allocation3 [shape = 's32[1]{0}', space=sflag, size = 0x4, scoped, tag = 'scoped memory for neural_net_forward.1']
    #allocation4 [shape = 'u8[8192]{0}', space=vmem, size = 0x2000, scoped, tag = 'input window, operand 1, single buffered']
    #allocation5 [shape = 's32[1]{0}', space=sflag, size = 0x4, scoped, tag = 'scoped memory for neural_net_forward.1']
    #allocation6 [shape = 'u8[512]{0}', space=vmem, size = 0x400, scoped, tag = 'input window, operand 2, single buffered']
    #allocation7 [shape = 'u8[65536]{0}', space=vmem, size = 0x10000, scoped, tag = 'input window, operand 3, single buffered']
    #allocation8 [shape = 's32[1]{0}', space=sflag, size = 0x4, scoped, tag = 'scoped memory for neural_net_forward.1']
    #allocation9 [shape = 'u8[65536]{0}', space=vmem, size = 0x10000, scoped, tag = 'input window, operand 5, single buffered']
    %12 = vsyncpa [#allocation3], 0
    %13 = vsyncpa [#allocation5], 0
    %14 = vsyncpa [#allocation8], 0
    // Predicated region
    $region2: #{neural_net_forward.1} parent=1 // pred_check
      _
    $region3: #{neural_net_forward.1} parent=1 // pred_check_branch
      %16 = sbr.rel (0) target = $region5
    $region4: #{neural_net_forward.1} parent=1 // pred_region
      %18 = vsyncadd [#allocation3], 0
      %s20 = sshll.u32 %s0, 4
      %s21 = int_to_ptr.hbm [resolvable:$true] %s20
      %s22 = sshll.u32 [#allocation2], 4
      %s23 = int_to_ptr.vmem [resolvable:$true] %s22
      %25 = dma.hbm_to_vmem [thread:$0]  %s21, 128, %s23, [#allocation3]
    $region5: #{neural_net_forward.1} parent=1 // pred_fallthru
      _
    // Predicated region
    $region6: #{neural_net_forward.1} parent=1 // pred_check
      _
    $region7: #{neural_net_forward.1} parent=1 // pred_check_branch
      %27 = sbr.rel (0) target = $region9
    $region8: #{neural_net_forward.1} parent=1 // pred_region
      %29 = vsyncadd [#allocation5], 0
      %s30 = sshll.u32 %s1, 4
      %s31 = int_to_ptr.hbm [resolvable:$true] %s30
      %s32 = sshll.u32 [#allocation4], 4
      %s33 = int_to_ptr.vmem [resolvable:$true] %s32
      %38 = dma.hbm_to_vmem [thread:$0]  %s31, 256, %s33, [#allocation5], 128, 128, 8
    $region9: #{neural_net_forward.1} parent=1 // pred_fallthru
      _
    // Predicated region
    $region10: #{neural_net_forward.1} parent=1 // pred_check
      _
    $region11: #{neural_net_forward.1} parent=1 // pred_check_branch
      %40 = sbr.rel (0) target = $region13
    $region12: #{neural_net_forward.1} parent=1 // pred_region
      %42 = vsyncadd [#allocation5], 0
      %s44 = sshll.u32 %s2, 4
      %s45 = int_to_ptr.hbm [resolvable:$true] %s44
      %s46 = sshll.u32 [#allocation6], 4
      %s47 = int_to_ptr.vmem [resolvable:$true] %s46
      %49 = dma.hbm_to_vmem [thread:$0]  %s45, 16, %s47, [#allocation5]
    $region13: #{neural_net_forward.1} parent=1 // pred_fallthru
      _
    // Predicated region
    $region14: #{neural_net_forward.1} parent=1 // pred_check
      _
    $region15: #{neural_net_forward.1} parent=1 // pred_check_branch
      %51 = sbr.rel (0) target = $region17
    $region16: #{neural_net_forward.1} parent=1 // pred_region
      %53 = vsyncadd [#allocation8], 0
      %s54 = sshll.u32 %s3, 4
      %s55 = int_to_ptr.hbm [resolvable:$true] %s54
      %s56 = sshll.u32 [#allocation7], 4
      %s57 = int_to_ptr.vmem [resolvable:$true] %s56
      %62 = dma.hbm_to_vmem [thread:$0]  %s55, 2048, %s57, [#allocation8], 128, 128, 8
    $region17: #{neural_net_forward.1} parent=1 // pred_fallthru
      _
    // Predicated region
    $region18: #{neural_net_forward.1} parent=1 // pred_check
      _
    $region19: #{neural_net_forward.1} parent=1 // pred_check_branch
      %64 = sbr.rel (0) target = $region21
    $region20: #{neural_net_forward.1} parent=1 // pred_region
      _
    $region21: #{neural_net_forward.1} parent=1 // pred_fallthru
      _
    // Predicated region
    $region22: #{neural_net_forward.1} parent=1 // pred_check
      _
    $region23: #{neural_net_forward.1} parent=1 // pred_check_branch
      %66 = sbr.rel (0) target = $region25
    $region24: #{neural_net_forward.1} parent=1 // pred_region
      %68 = vsyncadd [#allocation8], 0
      %s69 = sshll.u32 %s5, 4
      %s70 = int_to_ptr.hbm [resolvable:$true] %s69
      %s71 = sshll.u32 [#allocation9], 4
      %s72 = int_to_ptr.vmem [resolvable:$true] %s71
      %77 = dma.hbm_to_vmem [thread:$0]  %s70, 2048, %s72, [#allocation8], 128, 128, 8
    $region25: #{neural_net_forward.1} parent=1 // pred_fallthru
      _
    // Predicated region
    $region26: #{neural_net_forward.1} parent=1 // pred_check
      _
    $region27: #{neural_net_forward.1} parent=1 // pred_check_branch
      %79 = sbr.rel (0) target = $region29
    $region28: #{neural_net_forward.1} parent=1 // pred_region
      _
    $region29: #{neural_net_forward.1} parent=1 // pred_fallthru
      _
    // Predicated region
    $region30: #{neural_net_forward.1} parent=1 // pred_check
      _
    $region31: #{neural_net_forward.1} parent=1 // pred_check_branch
      %81 = sbr.rel (0) target = $region33
    $region32: #{neural_net_forward.1} parent=1 // pred_region
      %83 = dma.done [#allocation3], 128
    $region33: #{neural_net_forward.1} parent=1 // pred_fallthru
      _
    // Predicated region
    $region34: #{neural_net_forward.1} parent=1 // pred_check
      _
    $region35: #{neural_net_forward.1} parent=1 // pred_check_branch
      %85 = sbr.rel (0) target = $region37
    $region36: #{neural_net_forward.1} parent=1 // pred_region
      %87 = dma.done [#allocation5], 256
    $region37: #{neural_net_forward.1} parent=1 // pred_fallthru
      _
    // Predicated region
    $region38: #{neural_net_forward.1} parent=1 // pred_check
      _
    $region39: #{neural_net_forward.1} parent=1 // pred_check_branch
      %89 = sbr.rel (0) target = $region41
    $region40: #{neural_net_forward.1} parent=1 // pred_region
      %91 = dma.done [#allocation5], 16
    $region41: #{neural_net_forward.1} parent=1 // pred_fallthru
      _
    // Predicated region
    $region42: #{neural_net_forward.1} parent=1 // pred_check
      _
    $region43: #{neural_net_forward.1} parent=1 // pred_check_branch
      %93 = sbr.rel (0) target = $region45
    $region44: #{neural_net_forward.1} parent=1 // pred_region
      %95 = dma.done [#allocation8], 2048
    $region45: #{neural_net_forward.1} parent=1 // pred_fallthru
      _
    // Predicated region
    $region46: #{neural_net_forward.1} parent=1 // pred_check
      _
    $region47: #{neural_net_forward.1} parent=1 // pred_check_branch
      %97 = sbr.rel (0) target = $region49
    $region48: #{neural_net_forward.1} parent=1 // pred_region
      %99 = dma.done [#allocation8], 2048
    $region49: #{neural_net_forward.1} parent=1 // pred_fallthru
      _
    %v100 = vld [vmem:[#allocation2] sm:$0xff]
    %v101 = vld [vmem:[#allocation4] sm:$0xff]
    %v102 = vld [vmem:[#allocation4 + $0x8] sm:$0xff]
    %v103 = vld [vmem:[#allocation6] sm:$0x1]
    %v105 = vperm.slane %v103, 0
    %vm107 = vcmask 130048
    %v109 = vsel %vm107, %v100, 0
    %111 = vmatpush.msra.mxu0 0.0
    %112 = vmatpush.msra.mxu0 0.0
    %113 = vmatpush.msra.mxu0 0.0
    %114 = vmatpush.msra.mxu0 0.0
    %115 = vmatpush.msra.mxu0 0.0
    %116 = vmatpush.msra.mxu0 0.0
    %117 = vmatpush.msra.mxu0 0.0
    %118 = vmatpush.msra.mxu0 0.0
    %119 = vmatpush.msra.mxu0 0.0
    %120 = vmatpush.msra.mxu0 0.0
    %121 = vmatpush.msra.mxu0 0.0
    %122 = vmatpush.msra.mxu0 0.0
    %123 = vmatpush.msra.mxu0 0.0
    %124 = vmatpush.msra.mxu0 0.0
    %125 = vmatpush.msra.mxu0 %v102
    %126 = vmatpush.msra.mxu0 %v101
    %127 = vmatmul.f32.gmra.mxu0 %v109
    %v128 = vpop.f32.mrf.mxu0
    %v129 = vadd.f32 %v105, %v128
    %130 = vdwg.mxu0
    %v131 = vmax.f32 %v129, 0.0
    %v132 = vld [vmem:[#allocation7] sm:$0xff]
    %v133 = vld [vmem:[#allocation7 + $0x8] sm:$0xff]
    %v134 = vld [vmem:[#allocation7 + $0x10] sm:$0xff]
    %v135 = vld [vmem:[#allocation7 + $0x18] sm:$0xff]
    %v136 = vld [vmem:[#allocation7 + $0x20] sm:$0xff]
    %v137 = vld [vmem:[#allocation7 + $0x28] sm:$0xff]
    %v138 = vld [vmem:[#allocation7 + $0x30] sm:$0xff]
    %v139 = vld [vmem:[#allocation7 + $0x38] sm:$0xff]
    %v140 = vld [vmem:[#allocation7 + $0x40] sm:$0xff]
    %v141 = vld [vmem:[#allocation7 + $0x48] sm:$0xff]
    %v142 = vld [vmem:[#allocation7 + $0x50] sm:$0xff]
    %v143 = vld [vmem:[#allocation7 + $0x58] sm:$0xff]
    %v144 = vld [vmem:[#allocation7 + $0x60] sm:$0xff]
    %v145 = vld [vmem:[#allocation7 + $0x68] sm:$0xff]
    %v146 = vld [vmem:[#allocation7 + $0x70] sm:$0xff]
    %v147 = vld [vmem:[#allocation7 + $0x78] sm:$0xff]
    %v148 = vld [vmem:[%s4] sm:$0x1]
    %v150 = vperm.slane %v148, 0
    %152 = vmatpush.msra.mxu0 %v147
    %153 = vmatpush.msra.mxu0 %v146
    %154 = vmatpush.msra.mxu0 %v145
    %155 = vmatpush.msra.mxu0 %v144
    %156 = vmatpush.msra.mxu0 %v143
    %157 = vmatpush.msra.mxu0 %v142
    %158 = vmatpush.msra.mxu0 %v141
    %159 = vmatpush.msra.mxu0 %v140
    %160 = vmatpush.msra.mxu0 %v139
    %161 = vmatpush.msra.mxu0 %v138
    %162 = vmatpush.msra.mxu0 %v137
    %163 = vmatpush.msra.mxu0 %v136
    %164 = vmatpush.msra.mxu0 %v135
    %165 = vmatpush.msra.mxu0 %v134
    %166 = vmatpush.msra.mxu0 %v133
    %167 = vmatpush.msra.mxu0 %v132
    %168 = vmatmul.f32.gmra.mxu0 %v131
    %v169 = vpop.f32.mrf.mxu0
    %v170 = vadd.f32 %v150, %v169
    %171 = vdwg.mxu0
    %v172 = vmax.f32 %v170, 0.0
    %v173 = vld [vmem:[#allocation9] sm:$0xff]
    %v174 = vld [vmem:[#allocation9 + $0x8] sm:$0xff]
    %v175 = vld [vmem:[#allocation9 + $0x10] sm:$0xff]
    %v176 = vld [vmem:[#allocation9 + $0x18] sm:$0xff]
    %v177 = vld [vmem:[#allocation9 + $0x20] sm:$0xff]
    %v178 = vld [vmem:[#allocation9 + $0x28] sm:$0xff]
    %v179 = vld [vmem:[#allocation9 + $0x30] sm:$0xff]
    %v180 = vld [vmem:[#allocation9 + $0x38] sm:$0xff]
    %v181 = vld [vmem:[#allocation9 + $0x40] sm:$0xff]
    %v182 = vld [vmem:[#allocation9 + $0x48] sm:$0xff]
    %v183 = vld [vmem:[#allocation9 + $0x50] sm:$0xff]
    %v184 = vld [vmem:[#allocation9 + $0x58] sm:$0xff]
    %v185 = vld [vmem:[#allocation9 + $0x60] sm:$0xff]
    %v186 = vld [vmem:[#allocation9 + $0x68] sm:$0xff]
    %v187 = vld [vmem:[#allocation9 + $0x70] sm:$0xff]
    %v188 = vld [vmem:[#allocation9 + $0x78] sm:$0xff]
    %v189 = vld [vmem:[%s6] sm:$0x1]
    %v191 = vperm.slane %v189, 0
    %193 = vmatpush.msra.mxu0 %v188
    %194 = vmatpush.msra.mxu0 %v187
    %195 = vmatpush.msra.mxu0 %v186
    %196 = vmatpush.msra.mxu0 %v185
    %197 = vmatpush.msra.mxu0 %v184
    %198 = vmatpush.msra.mxu0 %v183
    %199 = vmatpush.msra.mxu0 %v182
    %200 = vmatpush.msra.mxu0 %v181
    %201 = vmatpush.msra.mxu0 %v180
    %202 = vmatpush.msra.mxu0 %v179
    %203 = vmatpush.msra.mxu0 %v178
    %204 = vmatpush.msra.mxu0 %v177
    %205 = vmatpush.msra.mxu0 %v176
    %206 = vmatpush.msra.mxu0 %v175
    %207 = vmatpush.msra.mxu0 %v174
    %208 = vmatpush.msra.mxu0 %v173
    %209 = vmatmul.f32.gmra.mxu0 %v172
    %v210 = vpop.f32.mrf.mxu0
    %v211 = vadd.f32 %v191, %v210
    %212 = vdwg.mxu0
    %213 = vst [vmem:[%s7] sm:$0xff] %v211
    // Predicated region
    $region50: #{neural_net_forward.1} parent=1 // pred_check
      _
    $region51: #{neural_net_forward.1} parent=1 // pred_check_branch
      %215 = sbr.rel (0) target = $region53
    $region52: #{neural_net_forward.1} parent=1 // pred_region
      _
    $region53: #{neural_net_forward.1} parent=1 // pred_fallthru
      _
    // Predicated region
    $region54: #{neural_net_forward.1} parent=1 // pred_check
      _
    $region55: #{neural_net_forward.1} parent=1 // pred_check_branch
      %217 = sbr.rel (0) target = $region57
    $region56: #{neural_net_forward.1} parent=1 // pred_region
      _
    $region57: #{neural_net_forward.1} parent=1 // pred_fallthru
      _
    %218 = vsyncpa [#allocation3], 1
    %219 = vsyncpa [#allocation5], 1
    %220 = vsyncpa [#allocation8], 1

</llo_original>
